<compile_context>
chip_gen: v6e
topology: v6e:2x2x1
jax: 0.10.0
libtpu: 0.0.40
codegen_flags: <defaults>
</compile_context>

<pallas_src>
import jax
import jax.numpy as jnp
from jax import lax
from jax.experimental import pallas as pl
from jax.experimental.pallas import tpu as pltpu


def _round_up(x, m):
    return ((x + m - 1) // m) * m


def _vmem_estimate(tile_b, tile_f, d_pad, k_pad):
    """Double-buffered inputs/outputs + resident accumulator, in bytes."""
    return (
        2 * tile_b * tile_f * 4      # x tile, f32, double-buffered
        + 2 * tile_f * d_pad * 2     # w tile, bf16, double-buffered
        + 2 * d_pad * k_pad * 2      # ce (grid-invariant), bf16
        + 2 * tile_b * k_pad * 4     # out tile, f32, double-buffered
        + tile_b * d_pad * 4         # accumulator scratch, f32
    )


def clipzs_kernel(x_ref, w_ref, ce_ref, o_ref, acc_ref):
    """Fused: visual projection (accumulated over F tiles) -> L2 normalize
    -> class similarity.

    x_ref  : [TILE_B, TILE_F] f32    flattened-image tile (cast to bf16 here)
    w_ref  : [TILE_F, D_pad]  bf16   visual-projection weight tile
    ce_ref : [D_pad, K_pad]   bf16   class embeddings, pre-transposed
    o_ref  : [TILE_B, K_pad]  f32    similarity logits (written on last k step)
    acc_ref: [TILE_B, D_pad]  f32    VMEM accumulator for the visual features
    """
    k = pl.program_id(1)

    @pl.when(k == 0)
    def _init():
        acc_ref[...] = jnp.zeros_like(acc_ref)

    # Partial visual projection: bf16 x bf16 -> f32 accumulate on the MXU.
    # The f32->bf16 cast of x is cheap VPU work hidden under the MXU.
    acc_ref[...] += jnp.dot(
        x_ref[...].astype(jnp.bfloat16),
        w_ref[...],
        preferred_element_type=jnp.float32,
    )

    @pl.when(k == pl.num_programs(1) - 1)
    def _finalize():
        feats = acc_ref[...]
        # visual_features / visual_features.norm(dim=-1, keepdim=True)
        # commuted past the matmul: sim = (feats @ ce) * rsqrt(sum(feats^2)).
        # (tiny clamp only protects zero-padded batch rows from inf*0 -> NaN;
        #  real rows have O(1) norms and are unaffected)
        sumsq = jnp.maximum(
            jnp.sum(feats * feats, axis=-1, keepdims=True), 1e-30
        )
        inv_norm = lax.rsqrt(sumsq)
        # sim = visual_features @ class_embeddings.T  (ce already [D, K_pad])
        sim = jnp.dot(
            feats.astype(jnp.bfloat16),
            ce_ref[...],
            preferred_element_type=jnp.float32,
        )
        o_ref[...] = sim * inv_norm


def prepare_clipzs_params(
    w_vis, class_embeddings, *, tile_f=2048, tile_b=256,
    vmem_budget_bytes=40 * 1024 * 1024,
):
    """One-time plumbing for the FROZEN weights (do not call per forward):
    bf16 casts, ce transpose, F/D/K padding, tile selection under a VMEM
    budget that is safe on v7x (64 MiB physical) and conservative on v5e/v6e.
    """
    F, D = w_vis.shape
    K = class_embeddings.shape[0]

    D_pad = _round_up(D, 128)                       # lane axis of feats / ce rows
    K_pad = _round_up(K, 128)                       # lane-dense output stores
    TILE_F = min(tile_f, _round_up(F, 128))
    TILE_B = max(16, tile_b)

    # Shrink tiles until the double-buffered footprint fits the VMEM budget.
    while TILE_F > 512 and _vmem_estimate(TILE_B, TILE_F, D_pad, K_pad) > vmem_budget_bytes:
        TILE_F //= 2
    while TILE_B > 16 and _vmem_estimate(TILE_B, TILE_F, D_pad, K_pad) > vmem_budget_bytes:
        TILE_B //= 2
    F_pad = _round_up(F, TILE_F)

    # Frozen visual projection weights: bf16, padded to [F_pad, D_pad].
    w = w_vis.astype(jnp.bfloat16)
    if F_pad != F or D_pad != D:
        w = jnp.pad(w, ((0, F_pad - F), (0, D_pad - D)))

    # Frozen class embeddings: bf16, pre-transposed to [D_pad, K_pad] so the
    # kernel never does an in-VMEM .T and K sits on the lane axis.
    ce = class_embeddings.astype(jnp.bfloat16).T
    if D_pad != D or K_pad != K:
        ce = jnp.pad(ce, ((0, D_pad - D), (0, K_pad - K)))

    return dict(
        w=w, ce=ce,
        F=F, D=D, K=K,
        F_pad=F_pad, D_pad=D_pad, K_pad=K_pad,
        TILE_F=TILE_F, tile_b=TILE_B,
    )


def clipzs_forward(images, params):
    """images: [B, C, H, W] (NCHW).  Returns sim: [B, K] float32."""
    w = params["w"]
    ce = params["ce"]
    F, K = params["F"], params["K"]
    F_pad, D_pad, K_pad = params["F_pad"], params["D_pad"], params["K_pad"]
    TILE_F = params["TILE_F"]

    B = images.shape[0]
    # Keep activations f32 in HBM (read exactly once by the kernel); the bf16
    # cast happens in-kernel on the VPU.
    x = images.reshape(B, -1).astype(jnp.float32)

    TILE_B = min(params["tile_b"], _round_up(B, 16))   # 16: bf16 sublane packing
    B_pad = _round_up(B, TILE_B)
    if B_pad != B or F_pad != F:
        x = jnp.pad(x, ((0, B_pad - B), (0, F_pad - F)))

    grid = (B_pad // TILE_B, F_pad // TILE_F)

    vmem_est = _vmem_estimate(TILE_B, TILE_F, D_pad, K_pad)
    vmem_limit = int(min(max(int(vmem_est * 1.5), 32 * 1024 * 1024),
                         64 * 1024 * 1024))

    cost = pl.CostEstimate(
        flops=2 * B_pad * F_pad * D_pad + 2 * B_pad * D_pad * K_pad,
        transcendentals=B_pad,
        bytes_accessed=(
            B_pad * F_pad * 4                              # x stream, f32
            + (B_pad // TILE_B) * F_pad * D_pad * 2        # w re-streamed per batch tile
            + D_pad * K_pad * 2                            # ce, once
            + B_pad * K_pad * 4                            # output
        ),
    )

    out = pl.pallas_call(
        clipzs_kernel,
        out_shape=jax.ShapeDtypeStruct((B_pad, K_pad), jnp.float32),
        grid_spec=pltpu.PrefetchScalarGridSpec(
            num_scalar_prefetch=0,
            grid=grid,
            in_specs=[
                pl.BlockSpec((TILE_B, TILE_F), lambda b, k: (b, k)),   # x (f32)
                pl.BlockSpec((TILE_F, D_pad), lambda b, k: (k, 0)),    # w (bf16)
                pl.BlockSpec((D_pad, K_pad), lambda b, k: (0, 0)),     # ce (bf16, grid-invariant)
            ],
            out_specs=pl.BlockSpec((TILE_B, K_pad), lambda b, k: (b, 0)),
            scratch_shapes=[pltpu.VMEM((TILE_B, D_pad), jnp.float32)],
        ),
        compiler_params=pltpu.CompilerParams(
            dimension_semantics=("parallel", "arbitrary"),
            vmem_limit_bytes=vmem_limit,
        ),
        cost_estimate=cost,
    )(x, w, ce)

    # Strip batch / class padding back to the module's output shape.
    return out[:B, :K]


def make_class_embeddings(key, num_classes, num_prompts, feature_dim):
    """Deterministic synthetic analogue of the __init__ class-embedding build:
    per-class prompt embeddings -> normalize by tensor norm -> mean over
    prompts -> concat -> divide by the whole-tensor norm."""
    keys = jax.random.split(key, num_classes)
    rows = []
    for k in keys:
        emb = jax.random.normal(k, (num_prompts, feature_dim), dtype=jnp.float32)
        emb = emb / jnp.linalg.norm(emb)          # class_embedding /= .norm()
        rows.append(jnp.mean(emb, axis=0)[None])  # .mean(0)[None]
    ce = jnp.concatenate(rows, axis=0)            # torch.cat(...)
    ce = ce / jnp.linalg.norm(ce)                 # self.class_embeddings /= .norm()
    return ce


def reference_forward(images, w_vis, class_embeddings):
    """Pure-JAX reference with matching numerics (bf16 operands, f32 accum,
    normalization commuted past the class-similarity matmul)."""
    B = images.shape[0]
    x = images.reshape(B, -1).astype(jnp.float32)
    feats = jnp.dot(
        x.astype(jnp.bfloat16),
        w_vis.astype(jnp.bfloat16),
        preferred_element_type=jnp.float32,
    )
    sumsq = jnp.sum(feats * feats, axis=-1, keepdims=True)
    sim = jnp.dot(
        feats.astype(jnp.bfloat16),
        class_embeddings.astype(jnp.bfloat16).T,
        preferred_element_type=jnp.float32,
    )
    return sim * lax.rsqrt(sumsq)


if __name__ == "__main__":
    # Small, forward-consistent shapes.
    B, C, H, W = 2, 4, 16, 16       # images: NCHW
    feature_dim = 128               # clip_model.visual.output_dim (synthetic)
    num_classes = 8
    num_prompts = 4

    root = jax.random.PRNGKey(0)
    k_img, k_w, k_ce = jax.random.split(root, 3)

    images = jax.random.normal(k_img, (B, C, H, W), dtype=jnp.float32)
    w_vis = (
        jax.random.normal(k_w, (C * H * W, feature_dim), dtype=jnp.float32)
        / jnp.sqrt(jnp.float32(C * H * W))
    )
    class_embeddings = make_class_embeddings(
        k_ce, num_classes, num_prompts, feature_dim
    )

    # Frozen-weight plumbing done once (not per forward call).
    params = prepare_clipzs_params(w_vis, class_embeddings)

    sim = clipzs_forward(images, params)
    sim = jax.block_until_ready(sim)

    ref = reference_forward(images, w_vis, class_embeddings)
    assert sim.shape == (B, num_classes)
    assert jnp.allclose(sim, ref, atol=5e-3, rtol=2e-2), "mismatch vs reference"

    print("KERNEL_OK")
</pallas_src>

<mosaic_0001>
module attributes {stable_mosaic.version = 11 : i64} {
  func.func @clipzs_kernel(%arg0: i32, %arg1: i32, %arg2: memref<16x1024xf32, #tpu.memory_space<vmem>>, %arg3: memref<1024x128xbf16, #tpu.memory_space<vmem>>, %arg4: memref<128x128xbf16, #tpu.memory_space<vmem>>, %arg5: memref<16x128xf32, #tpu.memory_space<vmem>>, %arg6: memref<16x128xf32, #tpu.memory_space<vmem>>) attributes {dimension_semantics = [#tpu.dimension_semantics<parallel>, #tpu.dimension_semantics<arbitrary>], iteration_bounds = array<i64: 1, 1>, scalar_prefetch = 0 : i64, scratch_operands = 1 : i64, tpu.core_type = #tpu.core_type<tc>, window_params = [{transform_indices = @transform_0, window_bounds = array<i64: 16, 1024>}, {transform_indices = @transform_1, window_bounds = array<i64: 1024, 128>}, {pipeline_mode = #tpu.pipeline_mode<synchronous>, transform_indices = @transform_2, window_bounds = array<i64: 128, 128>}, {transform_indices = @transform_3, window_bounds = array<i64: 16, 128>}]} {
    %c0_i32 = arith.constant 0 : i32
    %0 = arith.cmpi eq, %arg1, %c0_i32 : i32
    %1 = arith.extui %0 : i1 to i32
    %c0_i32_0 = arith.constant 0 : i32
    %2 = arith.cmpi ne, %1, %c0_i32_0 : i32
    scf.if %2 {
      %cst_10 = arith.constant 0.000000e+00 : f32
      %13 = vector.broadcast %cst_10 : f32 to vector<16x128xf32>
      %c0_11 = arith.constant 0 : index
      %c0_12 = arith.constant 0 : index
      %14 = vector.load %arg6[%c0_11, %c0_12] : memref<16x128xf32, #tpu.memory_space<vmem>>, vector<16x128xf32>
      tpu.vector_store %arg6[%c0_11, %c0_12], %13 {strides = array<i32>} : memref<16x128xf32, #tpu.memory_space<vmem>>, vector<16x128xf32>,
    } else {
    }
    %c0 = arith.constant 0 : index
    %c0_1 = arith.constant 0 : index
    %3 = vector.load %arg6[%c0, %c0_1] : memref<16x128xf32, #tpu.memory_space<vmem>>, vector<16x128xf32>
    %c0_2 = arith.constant 0 : index
    %c0_3 = arith.constant 0 : index
    %4 = vector.load %arg2[%c0_2, %c0_3] : memref<16x1024xf32, #tpu.memory_space<vmem>>, vector<16x1024xf32>
    %5 = arith.truncf %4 : vector<16x1024xf32> to vector<16x1024xbf16>
    %c0_4 = arith.constant 0 : index
    %c0_5 = arith.constant 0 : index
    %6 = vector.load %arg3[%c0_4, %c0_5] : memref<1024x128xbf16, #tpu.memory_space<vmem>>, vector<1024x128xbf16>
    %cst = arith.constant dense<0.000000e+00> : vector<16x128xf32>
    %7 = tpu.matmul %5, %6, %cst {dimension_numbers = #tpu.dot_dimension_numbers<[1], [0], [0], [1], [0, 0, 1, 1], [], []>} : vector<16x1024xbf16>, vector<1024x128xbf16>, vector<16x128xf32> -> vector<16x128xf32>
    %8 = arith.addf %3, %7 : vector<16x128xf32>
    %c0_6 = arith.constant 0 : index
    %c0_7 = arith.constant 0 : index
    %9 = vector.load %arg6[%c0_6, %c0_7] : memref<16x128xf32, #tpu.memory_space<vmem>>, vector<16x128xf32>
    tpu.vector_store %arg6[%c0_6, %c0_7], %8 {strides = array<i32>} : memref<16x128xf32, #tpu.memory_space<vmem>>, vector<16x128xf32>,
    %c0_i32_8 = arith.constant 0 : i32
    %10 = arith.cmpi eq, %arg1, %c0_i32_8 : i32
    %11 = arith.extui %10 : i1 to i32
    %c0_i32_9 = arith.constant 0 : i32
    %12 = arith.cmpi ne, %11, %c0_i32_9 : i32
    scf.if %12 {
      %c0_10 = arith.constant 0 : index
      %c0_11 = arith.constant 0 : index
      %13 = vector.load %arg6[%c0_10, %c0_11] : memref<16x128xf32, #tpu.memory_space<vmem>>, vector<16x128xf32>
      %14 = arith.mulf %13, %13 : vector<16x128xf32>
      %cst_12 = arith.constant dense<0.000000e+00> : vector<16xf32>
      %15 = vector.multi_reduction <add>, %14, %cst_12 [1] : vector<16x128xf32> to vector<16xf32>
      %16 = vector.shape_cast %15 : vector<16xf32> to vector<16x1xf32>
      %cst_13 = arith.constant 1.000000e-30 : f32
      %17 = vector.broadcast %cst_13 : f32 to vector<16x1xf32>
      %18 = arith.maximumf %16, %17 : vector<16x1xf32>
      %19 = math.rsqrt %18 : vector<16x1xf32>
      %20 = arith.truncf %13 : vector<16x128xf32> to vector<16x128xbf16>
      %c0_14 = arith.constant 0 : index
      %c0_15 = arith.constant 0 : index
      %21 = vector.load %arg4[%c0_14, %c0_15] : memref<128x128xbf16, #tpu.memory_space<vmem>>, vector<128x128xbf16>
      %cst_16 = arith.constant dense<0.000000e+00> : vector<16x128xf32>
      %22 = tpu.matmul %20, %21, %cst_16 {dimension_numbers = #tpu.dot_dimension_numbers<[1], [0], [0], [1], [0, 0, 1, 1], [], []>} : vector<16x128xbf16>, vector<128x128xbf16>, vector<16x128xf32> -> vector<16x128xf32>
      %23 = vector.broadcast %19 : vector<16x1xf32> to vector<16x128xf32>
      %24 = arith.mulf %22, %23 : vector<16x128xf32>
      %c0_17 = arith.constant 0 : index
      %c0_18 = arith.constant 0 : index
      %25 = vector.load %arg5[%c0_17, %c0_18] : memref<16x128xf32, #tpu.memory_space<vmem>>, vector<16x128xf32>
      tpu.vector_store %arg5[%c0_17, %c0_18], %24 {strides = array<i32>} : memref<16x128xf32, #tpu.memory_space<vmem>>, vector<16x128xf32>,
    } else {
    }
    return
  }
  func.func @transform_0(%arg0: i32, %arg1: i32) -> (i32, i32) {
    %c0_i32 = arith.constant 0 : i32
    return %arg0, %arg1 : i32, i32
  }
  func.func @transform_1(%arg0: i32, %arg1: i32) -> (i32, i32) {
    %c0_i32 = arith.constant 0 : i32
    %c0_i32_0 = arith.constant 0 : i32
    return %arg1, %c0_i32 : i32, i32
  }
  func.func @transform_2(%arg0: i32, %arg1: i32) -> (i32, i32) {
    %c0_i32 = arith.constant 0 : i32
    %c0_i32_0 = arith.constant 0 : i32
    %c0_i32_1 = arith.constant 0 : i32
    return %c0_i32, %c0_i32_0 : i32, i32
  }
  func.func @transform_3(%arg0: i32, %arg1: i32) -> (i32, i32) {
    %c0_i32 = arith.constant 0 : i32
    %c0_i32_0 = arith.constant 0 : i32
    return %arg0, %c0_i32 : i32, i32
  }
}

</mosaic_0001>

<llo_original>
// kernel: tpu_custom_call.1
$region0: #{tpu_custom_call.1}
  #allocation0 [shape = 'u32[]', space=smem, size = 0x4, offset = 0x4, fixed_abs, tag = 'smem constant byte address 0x4 - core index']
  #allocation1 [shape = 'u32[144,128]{1,0:T(1,128)}', space=vmem, size = 0x12000, scoped, tag = 'internal scratch']
  #allocation2 [shape = 'f32[16,128]{1,0:T(8,128)}', space=vmem, size = 0x2000, scoped, tag = 'scratch operand']
  %s0 = inlined_call_operand.hbm [shape: f32[16,1024], index: 0, kind: input, shape index: {}]
  %s1 = inlined_call_operand.hbm [shape: bf16[1024,128], index: 1, kind: input, shape index: {}]
  %s2 = inlined_call_operand.hbm [shape: bf16[128,128], index: 2, kind: input, shape index: {}]
  %s3 = inlined_call_operand.hbm [shape: f32[16,128], index: 3, kind: output, shape index: {}]
  %s4 = sld [smem:[#allocation0]]
  $region42: #{tpu_custom_call.1} parent=0
    _
  %s6 = ssub.s32 1, %s4
  %s7 = scalar_select 0, %s6, %s4
  $region1: #{tpu_custom_call.1} parent=0
    #allocation3 [shape = 'u8[65536]{0}', space=vmem, size = 0x10000, scoped, tag = 'input window, operand 0, single buffered']
    #allocation4 [shape = 's32[1]{0}', space=sflag, size = 0x4, scoped, tag = 'scoped memory for tpu_custom_call.1']
    #allocation5 [shape = 's32[1]{0}', space=sflag, size = 0x4, scoped, tag = 'scoped memory for tpu_custom_call.1']
    #allocation6 [shape = 'u8[262144]{0}', space=vmem, size = 0x40000, scoped, tag = 'input window, operand 1, single buffered']
    #allocation7 [shape = 's32[1]{0}', space=sflag, size = 0x4, scoped, tag = 'scoped memory for tpu_custom_call.1']
    #allocation8 [shape = 'u8[32768]{0}', space=vmem, size = 0x8000, scoped, tag = 'input window, operand 2, single buffered']
    #allocation9 [shape = 'u8[8192]{0}', space=vmem, size = 0x2000, scoped, tag = 'output window, operand 0, single buffered']
    %8 = vsyncpa [#allocation4], 0
    %9 = vsyncpa [#allocation7], 0
    %10 = vsyncpa [#allocation5], 0
    // Predicated region
    $region2: #{tpu_custom_call.1} parent=1 // pred_check
      _
    $region3: #{tpu_custom_call.1} parent=1 // pred_check_branch
      %12 = sbr.rel (0) target = $region5
    $region4: #{tpu_custom_call.1} parent=1 // pred_region
      %s14 = ssub.s32 2048, 2048
      %15 = vsyncadd [#allocation4], %s14
      %s16 = sshll.u32 [#allocation3], 4
      %s17 = int_to_ptr.vmem [resolvable:$true] %s16
      %22 = dma.hbm_to_vmem [thread:$0]  %s0, 2048, %s17, [#allocation4], 1024, 1024, 64
    $region5: #{tpu_custom_call.1} parent=1 // pred_fallthru
      _
    // Predicated region
    $region6: #{tpu_custom_call.1} parent=1 // pred_check
      _
    $region7: #{tpu_custom_call.1} parent=1 // pred_check_branch
      %24 = sbr.rel (0) target = $region9
    $region8: #{tpu_custom_call.1} parent=1 // pred_region
      %s26 = ssub.s32 8192, 8192
      %27 = vsyncadd [#allocation7], %s26
      %s28 = sshll.u32 [#allocation6], 4
      %s29 = int_to_ptr.vmem [resolvable:$true] %s28
      %34 = dma.hbm_to_vmem [thread:$0]  %s1, 8192, %s29, [#allocation7], 64, 64, 4
    $region9: #{tpu_custom_call.1} parent=1 // pred_fallthru
      _
    // Predicated region
    $region10: #{tpu_custom_call.1} parent=1 // pred_check
      _
    $region11: #{tpu_custom_call.1} parent=1 // pred_check_branch
      %36 = sbr.rel (0) target = $region13
    $region12: #{tpu_custom_call.1} parent=1 // pred_region
      %s38 = ssub.s32 1024, 1024
      %39 = vsyncadd [#allocation7], %s38
      %s40 = sshll.u32 [#allocation8], 4
      %s41 = int_to_ptr.vmem [resolvable:$true] %s40
      %46 = dma.hbm_to_vmem [thread:$0]  %s2, 1024, %s41, [#allocation7], 64, 64, 4
    $region13: #{tpu_custom_call.1} parent=1 // pred_fallthru
      _
    // Predicated region
    $region14: #{tpu_custom_call.1} parent=1 // pred_check
      _
    $region15: #{tpu_custom_call.1} parent=1 // pred_check_branch
      %48 = sbr.rel (0) target = $region17
    $region16: #{tpu_custom_call.1} parent=1 // pred_region
      %49 = dma.done [#allocation4], 2048
    $region17: #{tpu_custom_call.1} parent=1 // pred_fallthru
      _
    // Predicated region
    $region18: #{tpu_custom_call.1} parent=1 // pred_check
      _
    $region19: #{tpu_custom_call.1} parent=1 // pred_check_branch
      %51 = sbr.rel (0) target = $region21
    $region20: #{tpu_custom_call.1} parent=1 // pred_region
      %52 = dma.done [#allocation7], 8192
    $region21: #{tpu_custom_call.1} parent=1 // pred_fallthru
      _
    // Predicated region
    $region22: #{tpu_custom_call.1} parent=1 // pred_check
      _
    $region23: #{tpu_custom_call.1} parent=1 // pred_check_branch
      %54 = sbr.rel (0) target = $region25
    $region24: #{tpu_custom_call.1} parent=1 // pred_region
      %55 = dma.done [#allocation7], 1024
    $region25: #{tpu_custom_call.1} parent=1 // pred_fallthru
      _
    %p57 = scmp.eq.s32.totalorder 0, 0
    // Predicated region
    $region26: #{tpu_custom_call.1} parent=1 // pred_check
      %p58 = pneg %p57
    $region27: #{tpu_custom_call.1} parent=1 // pred_check_branch
      %60 = sbr.rel (%p58) target = $region29
    $region28: #{tpu_custom_call.1} parent=1 // pred_region
      %61 = vst [vmem:[#allocation2] sm:$0xff] 0.0
      %62 = vst [vmem:[#allocation2 + $0x8] sm:$0xff] 0.0
    $region29: #{tpu_custom_call.1} parent=1 // pred_fallthru
      _
    %v63 = vld [vmem:[#allocation2] sm:$0xff]
    %v64 = vld [vmem:[#allocation2 + $0x8] sm:$0xff]
    %v65 = vld [vmem:[#allocation3] sm:$0xff]
    %v66 = vld [vmem:[#allocation3 + $0x8] sm:$0xff]
    %v67 = vld [vmem:[#allocation3 + $0x10] sm:$0xff]
    %v68 = vld [vmem:[#allocation3 + $0x18] sm:$0xff]
    %v69 = vld [vmem:[#allocation3 + $0x20] sm:$0xff]
    %v70 = vld [vmem:[#allocation3 + $0x28] sm:$0xff]
    %v71 = vld [vmem:[#allocation3 + $0x30] sm:$0xff]
    %v72 = vld [vmem:[#allocation3 + $0x38] sm:$0xff]
    %v73 = vld [vmem:[#allocation3 + $0x40] sm:$0xff]
    %v74 = vld [vmem:[#allocation3 + $0x48] sm:$0xff]
    %v75 = vld [vmem:[#allocation3 + $0x50] sm:$0xff]
    %v76 = vld [vmem:[#allocation3 + $0x58] sm:$0xff]
    %v77 = vld [vmem:[#allocation3 + $0x60] sm:$0xff]
    %v78 = vld [vmem:[#allocation3 + $0x68] sm:$0xff]
    %v79 = vld [vmem:[#allocation3 + $0x70] sm:$0xff]
    %v80 = vld [vmem:[#allocation3 + $0x78] sm:$0xff]
    %v81 = vpack.c.bf16 %v73, %v65
    %v82 = vpack.c.bf16 %v74, %v66
    %v83 = vpack.c.bf16 %v75, %v67
    %v84 = vpack.c.bf16 %v76, %v68
    %v85 = vpack.c.bf16 %v77, %v69
    %v86 = vpack.c.bf16 %v78, %v70
    %v87 = vpack.c.bf16 %v79, %v71
    %v88 = vpack.c.bf16 %v80, %v72
    %v89 = vld [vmem:[#allocation6] sm:$0xf]
    %v90 = vld [vmem:[#allocation6 + $0x4] sm:$0xf]
    %v91 = vld [vmem:[#allocation6 + $0x8] sm:$0xf]
    %v92 = vld [vmem:[#allocation6 + $0xc] sm:$0xf]
    %v93 = vld [vmem:[#allocation6 + $0x10] sm:$0xf]
    %v94 = vld [vmem:[#allocation6 + $0x14] sm:$0xf]
    %v95 = vld [vmem:[#allocation6 + $0x18] sm:$0xf]
    %v96 = vld [vmem:[#allocation6 + $0x1c] sm:$0xf]
    %v97 = vld [vmem:[#allocation6 + $0x20] sm:$0xf]
    %v98 = vld [vmem:[#allocation6 + $0x24] sm:$0xf]
    %v99 = vld [vmem:[#allocation6 + $0x28] sm:$0xf]
    %v100 = vld [vmem:[#allocation6 + $0x2c] sm:$0xf]
    %v101 = vld [vmem:[#allocation6 + $0x30] sm:$0xf]
    %v102 = vld [vmem:[#allocation6 + $0x34] sm:$0xf]
    %v103 = vld [vmem:[#allocation6 + $0x38] sm:$0xf]
    %v104 = vld [vmem:[#allocation6 + $0x3c] sm:$0xf]
    %v105 = vld [vmem:[#allocation6 + $0x40] sm:$0xf]
    %v106 = vld [vmem:[#allocation6 + $0x44] sm:$0xf]
    %v107 = vld [vmem:[#allocation6 + $0x48] sm:$0xf]
    %v108 = vld [vmem:[#allocation6 + $0x4c] sm:$0xf]
    %v109 = vld [vmem:[#allocation6 + $0x50] sm:$0xf]
    %v110 = vld [vmem:[#allocation6 + $0x54] sm:$0xf]
    %v111 = vld [vmem:[#allocation6 + $0x58] sm:$0xf]
    %v112 = vld [vmem:[#allocation6 + $0x5c] sm:$0xf]
    %v113 = vld [vmem:[#allocation6 + $0x60] sm:$0xf]
    %v114 = vld [vmem:[#allocation6 + $0x64] sm:$0xf]
    %v115 = vld [vmem:[#allocation6 + $0x68] sm:$0xf]
    %v116 = vld [vmem:[#allocation6 + $0x6c] sm:$0xf]
    %v117 = vld [vmem:[#allocation6 + $0x70] sm:$0xf]
    %v118 = vld [vmem:[#allocation6 + $0x74] sm:$0xf]
    %v119 = vld [vmem:[#allocation6 + $0x78] sm:$0xf]
    %v120 = vld [vmem:[#allocation6 + $0x7c] sm:$0xf]
    %v121 = vld [vmem:[#allocation6 + $0x80] sm:$0xf]
    %v122 = vld [vmem:[#allocation6 + $0x84] sm:$0xf]
    %v123 = vld [vmem:[#allocation6 + $0x88] sm:$0xf]
    %v124 = vld [vmem:[#allocation6 + $0x8c] sm:$0xf]
    %v125 = vld [vmem:[#allocation6 + $0x90] sm:$0xf]
    %v126 = vld [vmem:[#allocation6 + $0x94] sm:$0xf]
    %v127 = vld [vmem:[#allocation6 + $0x98] sm:$0xf]
    %v128 = vld [vmem:[#allocation6 + $0x9c] sm:$0xf]
    %v129 = vld [vmem:[#allocation6 + $0xa0] sm:$0xf]
    %v130 = vld [vmem:[#allocation6 + $0xa4] sm:$0xf]
    %v131 = vld [vmem:[#allocation6 + $0xa8] sm:$0xf]
    %v132 = vld [vmem:[#allocation6 + $0xac] sm:$0xf]
    %v133 = vld [vmem:[#allocation6 + $0xb0] sm:$0xf]
    %v134 = vld [vmem:[#allocation6 + $0xb4] sm:$0xf]
    %v135 = vld [vmem:[#allocation6 + $0xb8] sm:$0xf]
    %v136 = vld [vmem:[#allocation6 + $0xbc] sm:$0xf]
    %v137 = vld [vmem:[#allocation6 + $0xc0] sm:$0xf]
    %v138 = vld [vmem:[#allocation6 + $0xc4] sm:$0xf]
    %v139 = vld [vmem:[#allocation6 + $0xc8] sm:$0xf]
    %v140 = vld [vmem:[#allocation6 + $0xcc] sm:$0xf]
    %v141 = vld [vmem:[#allocation6 + $0xd0] sm:$0xf]
    %v142 = vld [vmem:[#allocation6 + $0xd4] sm:$0xf]
    %v143 = vld [vmem:[#allocation6 + $0xd8] sm:$0xf]
    %v144 = vld [vmem:[#allocation6 + $0xdc] sm:$0xf]
    %v145 = vld [vmem:[#allocation6 + $0xe0] sm:$0xf]
    %v146 = vld [vmem:[#allocation6 + $0xe4] sm:$0xf]
    %v147 = vld [vmem:[#allocation6 + $0xe8] sm:$0xf]
    %v148 = vld [vmem:[#allocation6 + $0xec] sm:$0xf]
    %v149 = vld [vmem:[#allocation6 + $0xf0] sm:$0xf]
    %v150 = vld [vmem:[#allocation6 + $0xf4] sm:$0xf]
    %v151 = vld [vmem:[#allocation6 + $0xf8] sm:$0xf]
    %v152 = vld [vmem:[#allocation6 + $0xfc] sm:$0xf]
    %v153 = vld [vmem:[#allocation6 + $0x100] sm:$0xf]
    %v154 = vld [vmem:[#allocation6 + $0x104] sm:$0xf]
    %v155 = vld [vmem:[#allocation6 + $0x108] sm:$0xf]
    %v156 = vld [vmem:[#allocation6 + $0x10c] sm:$0xf]
    %v157 = vld [vmem:[#allocation6 + $0x110] sm:$0xf]
    %v158 = vld [vmem:[#allocation6 + $0x114] sm:$0xf]
    %v159 = vld [vmem:[#allocation6 + $0x118] sm:$0xf]
    %v160 = vld [vmem:[#allocation6 + $0x11c] sm:$0xf]
    %v161 = vld [vmem:[#allocation6 + $0x120] sm:$0xf]
    %v162 = vld [vmem:[#allocation6 + $0x124] sm:$0xf]
    %v163 = vld [vmem:[#allocation6 + $0x128] sm:$0xf]
    %v164 = vld [vmem:[#allocation6 + $0x12c] sm:$0xf]
    %v165 = vld [vmem:[#allocation6 + $0x130] sm:$0xf]
    %v166 = vld [vmem:[#allocation6 + $0x134] sm:$0xf]
    %v167 = vld [vmem:[#allocation6 + $0x138] sm:$0xf]
    %v168 = vld [vmem:[#allocation6 + $0x13c] sm:$0xf]
    %v169 = vld [vmem:[#allocation6 + $0x140] sm:$0xf]
    %v170 = vld [vmem:[#allocation6 + $0x144] sm:$0xf]
    %v171 = vld [vmem:[#allocation6 + $0x148] sm:$0xf]
    %v172 = vld [vmem:[#allocation6 + $0x14c] sm:$0xf]
    %v173 = vld [vmem:[#allocation6 + $0x150] sm:$0xf]
    %v174 = vld [vmem:[#allocation6 + $0x154] sm:$0xf]
    %v175 = vld [vmem:[#allocation6 + $0x158] sm:$0xf]
    %v176 = vld [vmem:[#allocation6 + $0x15c] sm:$0xf]
    %v177 = vld [vmem:[#allocation6 + $0x160] sm:$0xf]
    %v178 = vld [vmem:[#allocation6 + $0x164] sm:$0xf]
    %v179 = vld [vmem:[#allocation6 + $0x168] sm:$0xf]
    %v180 = vld [vmem:[#allocation6 + $0x16c] sm:$0xf]
    %v181 = vld [vmem:[#allocation6 + $0x170] sm:$0xf]
    %v182 = vld [vmem:[#allocation6 + $0x174] sm:$0xf]
    %v183 = vld [vmem:[#allocation6 + $0x178] sm:$0xf]
    %v184 = vld [vmem:[#allocation6 + $0x17c] sm:$0xf]
    %v185 = vld [vmem:[#allocation6 + $0x180] sm:$0xf]
    %v186 = vld [vmem:[#allocation6 + $0x184] sm:$0xf]
    %v187 = vld [vmem:[#allocation6 + $0x188] sm:$0xf]
    %v188 = vld [vmem:[#allocation6 + $0x18c] sm:$0xf]
    %v189 = vld [vmem:[#allocation6 + $0x190] sm:$0xf]
    %v190 = vld [vmem:[#allocation6 + $0x194] sm:$0xf]
    %v191 = vld [vmem:[#allocation6 + $0x198] sm:$0xf]
    %v192 = vld [vmem:[#allocation6 + $0x19c] sm:$0xf]
    %v193 = vld [vmem:[#allocation6 + $0x1a0] sm:$0xf]
    %v194 = vld [vmem:[#allocation6 + $0x1a4] sm:$0xf]
    %v195 = vld [vmem:[#allocation6 + $0x1a8] sm:$0xf]
    %v196 = vld [vmem:[#allocation6 + $0x1ac] sm:$0xf]
    %v197 = vld [vmem:[#allocation6 + $0x1b0] sm:$0xf]
    %v198 = vld [vmem:[#allocation6 + $0x1b4] sm:$0xf]
    %v199 = vld [vmem:[#allocation6 + $0x1b8] sm:$0xf]
    %v200 = vld [vmem:[#allocation6 + $0x1bc] sm:$0xf]
    %v201 = vld [vmem:[#allocation6 + $0x1c0] sm:$0xf]
    %v202 = vld [vmem:[#allocation6 + $0x1c4] sm:$0xf]
    %v203 = vld [vmem:[#allocation6 + $0x1c8] sm:$0xf]
    %v204 = vld [vmem:[#allocation6 + $0x1cc] sm:$0xf]
    %v205 = vld [vmem:[#allocation6 + $0x1d0] sm:$0xf]
    %v206 = vld [vmem:[#allocation6 + $0x1d4] sm:$0xf]
    %v207 = vld [vmem:[#allocation6 + $0x1d8] sm:$0xf]
    %v208 = vld [vmem:[#allocation6 + $0x1dc] sm:$0xf]
    %v209 = vld [vmem:[#allocation6 + $0x1e0] sm:$0xf]
    %v210 = vld [vmem:[#allocation6 + $0x1e4] sm:$0xf]
    %v211 = vld [vmem:[#allocation6 + $0x1e8] sm:$0xf]
    %v212 = vld [vmem:[#allocation6 + $0x1ec] sm:$0xf]
    %v213 = vld [vmem:[#allocation6 + $0x1f0] sm:$0xf]
    %v214 = vld [vmem:[#allocation6 + $0x1f4] sm:$0xf]
    %v215 = vld [vmem:[#allocation6 + $0x1f8] sm:$0xf]
    %v216 = vld [vmem:[#allocation6 + $0x1fc] sm:$0xf]
    %v345 = vunpack.c.l.b16 %v89
    %v346 = vunpack.c.l.b16 %v90
    %v347 = vunpack.c.l.b16 %v91
    %v348 = vunpack.c.l.b16 %v92
    %v349 = vunpack.c.l.b16 %v93
    %v350 = vunpack.c.l.b16 %v94
    %v351 = vunpack.c.l.b16 %v95
    %v352 = vunpack.c.l.b16 %v96
    %v353 = vunpack.c.l.b16 %v97
    %v354 = vunpack.c.l.b16 %v98
    %v355 = vunpack.c.l.b16 %v99
    %v356 = vunpack.c.l.b16 %v100
    %v357 = vunpack.c.l.b16 %v101
    %v358 = vunpack.c.l.b16 %v102
    %v359 = vunpack.c.l.b16 %v103
    %v360 = vunpack.c.l.b16 %v104
    %v361 = vunpack.c.l.b16 %v105
    %v362 = vunpack.c.l.b16 %v106
    %v363 = vunpack.c.l.b16 %v107
    %v364 = vunpack.c.l.b16 %v108
    %v365 = vunpack.c.l.b16 %v109
    %v366 = vunpack.c.l.b16 %v110
    %v367 = vunpack.c.l.b16 %v111
    %v368 = vunpack.c.l.b16 %v112
    %v369 = vunpack.c.l.b16 %v113
    %v370 = vunpack.c.l.b16 %v114
    %v371 = vunpack.c.l.b16 %v115
    %v372 = vunpack.c.l.b16 %v116
    %v373 = vunpack.c.l.b16 %v117
    %v374 = vunpack.c.l.b16 %v118
    %v375 = vunpack.c.l.b16 %v119
    %v376 = vunpack.c.l.b16 %v120
    %v377 = vunpack.c.l.b16 %v121
    %v378 = vunpack.c.l.b16 %v122
    %v379 = vunpack.c.l.b16 %v123
    %v380 = vunpack.c.l.b16 %v124
    %v381 = vunpack.c.l.b16 %v125
    %v382 = vunpack.c.l.b16 %v126
    %v383 = vunpack.c.l.b16 %v127
    %v384 = vunpack.c.l.b16 %v128
    %v385 = vunpack.c.l.b16 %v129
    %v386 = vunpack.c.l.b16 %v130
    %v387 = vunpack.c.l.b16 %v131
    %v388 = vunpack.c.l.b16 %v132
    %v389 = vunpack.c.l.b16 %v133
    %v390 = vunpack.c.l.b16 %v134
    %v391 = vunpack.c.l.b16 %v135
    %v392 = vunpack.c.l.b16 %v136
    %v393 = vunpack.c.l.b16 %v137
    %v394 = vunpack.c.l.b16 %v138
    %v395 = vunpack.c.l.b16 %v139
    %v396 = vunpack.c.l.b16 %v140
    %v397 = vunpack.c.l.b16 %v141
    %v398 = vunpack.c.l.b16 %v142
    %v399 = vunpack.c.l.b16 %v143
    %v400 = vunpack.c.l.b16 %v144
    %v401 = vunpack.c.l.b16 %v145
    %v402 = vunpack.c.l.b16 %v146
    %v403 = vunpack.c.l.b16 %v147
    %v404 = vunpack.c.l.b16 %v148
    %v405 = vunpack.c.l.b16 %v149
    %v406 = vunpack.c.l.b16 %v150
    %v407 = vunpack.c.l.b16 %v151
    %v408 = vunpack.c.l.b16 %v152
    %v409 = vunpack.c.l.b16 %v153
    %v410 = vunpack.c.l.b16 %v154
    %v411 = vunpack.c.l.b16 %v155
    %v412 = vunpack.c.l.b16 %v156
    %v413 = vunpack.c.l.b16 %v157
    %v414 = vunpack.c.l.b16 %v158
    %v415 = vunpack.c.l.b16 %v159
    %v416 = vunpack.c.l.b16 %v160
    %v417 = vunpack.c.l.b16 %v161
    %v418 = vunpack.c.l.b16 %v162
    %v419 = vunpack.c.l.b16 %v163
    %v420 = vunpack.c.l.b16 %v164
    %v421 = vunpack.c.l.b16 %v165
    %v422 = vunpack.c.l.b16 %v166
    %v423 = vunpack.c.l.b16 %v167
    %v424 = vunpack.c.l.b16 %v168
    %v425 = vunpack.c.l.b16 %v169
    %v426 = vunpack.c.l.b16 %v170
    %v427 = vunpack.c.l.b16 %v171
    %v428 = vunpack.c.l.b16 %v172
    %v429 = vunpack.c.l.b16 %v173
    %v430 = vunpack.c.l.b16 %v174
    %v431 = vunpack.c.l.b16 %v175
    %v432 = vunpack.c.l.b16 %v176
    %v433 = vunpack.c.l.b16 %v177
    %v434 = vunpack.c.l.b16 %v178
    %v435 = vunpack.c.l.b16 %v179
    %v436 = vunpack.c.l.b16 %v180
    %v437 = vunpack.c.l.b16 %v181
    %v438 = vunpack.c.l.b16 %v182
    %v439 = vunpack.c.l.b16 %v183
    %v440 = vunpack.c.l.b16 %v184
    %v441 = vunpack.c.l.b16 %v185
    %v442 = vunpack.c.l.b16 %v186
    %v443 = vunpack.c.l.b16 %v187
    %v444 = vunpack.c.l.b16 %v188
    %v445 = vunpack.c.l.b16 %v189
    %v446 = vunpack.c.l.b16 %v190
    %v447 = vunpack.c.l.b16 %v191
    %v448 = vunpack.c.l.b16 %v192
    %v449 = vunpack.c.l.b16 %v193
    %v450 = vunpack.c.l.b16 %v194
    %v451 = vunpack.c.l.b16 %v195
    %v452 = vunpack.c.l.b16 %v196
    %v453 = vunpack.c.l.b16 %v197
    %v454 = vunpack.c.l.b16 %v198
    %v455 = vunpack.c.l.b16 %v199
    %v456 = vunpack.c.l.b16 %v200
    %v457 = vunpack.c.l.b16 %v201
    %v458 = vunpack.c.l.b16 %v202
    %v459 = vunpack.c.l.b16 %v203
    %v460 = vunpack.c.l.b16 %v204
    %v461 = vunpack.c.l.b16 %v205
    %v462 = vunpack.c.l.b16 %v206
    %v463 = vunpack.c.l.b16 %v207
    %v464 = vunpack.c.l.b16 %v208
    %v465 = vunpack.c.l.b16 %v209
    %v466 = vunpack.c.l.b16 %v210
    %v467 = vunpack.c.l.b16 %v211
    %v468 = vunpack.c.l.b16 %v212
    %v469 = vunpack.c.l.b16 %v213
    %v470 = vunpack.c.l.b16 %v214
    %v471 = vunpack.c.l.b16 %v215
    %v472 = vunpack.c.l.b16 %v216
    %v473 = vpack.c.b16 %v346, %v345
    %v474 = vpack.c.b16 %v348, %v347
    %v475 = vpack.c.b16 %v350, %v349
    %v476 = vpack.c.b16 %v352, %v351
    %v477 = vpack.c.b16 %v354, %v353
    %v478 = vpack.c.b16 %v356, %v355
    %v479 = vpack.c.b16 %v358, %v357
    %v480 = vpack.c.b16 %v360, %v359
    %v481 = vpack.c.b16 %v362, %v361
    %v482 = vpack.c.b16 %v364, %v363
    %v483 = vpack.c.b16 %v366, %v365
    %v484 = vpack.c.b16 %v368, %v367
    %v485 = vpack.c.b16 %v370, %v369
    %v486 = vpack.c.b16 %v372, %v371
    %v487 = vpack.c.b16 %v374, %v373
    %v488 = vpack.c.b16 %v376, %v375
    %v489 = vpack.c.b16 %v378, %v377
    %v490 = vpack.c.b16 %v380, %v379
    %v491 = vpack.c.b16 %v382, %v381
    %v492 = vpack.c.b16 %v384, %v383
    %v493 = vpack.c.b16 %v386, %v385
    %v494 = vpack.c.b16 %v388, %v387
    %v495 = vpack.c.b16 %v390, %v389
    %v496 = vpack.c.b16 %v392, %v391
    %v497 = vpack.c.b16 %v394, %v393
    %v498 = vpack.c.b16 %v396, %v395
    %v499 = vpack.c.b16 %v398, %v397
    %v500 = vpack.c.b16 %v400, %v399
    %v501 = vpack.c.b16 %v402, %v401
    %v502 = vpack.c.b16 %v404, %v403
    %v503 = vpack.c.b16 %v406, %v405
    %v504 = vpack.c.b16 %v408, %v407
    %v505 = vpack.c.b16 %v410, %v409
    %v506 = vpack.c.b16 %v412, %v411
    %v507 = vpack.c.b16 %v414, %v413
    %v508 = vpack.c.b16 %v416, %v415
    %v509 = vpack.c.b16 %v418, %v417
    %v510 = vpack.c.b16 %v420, %v419
    %v511 = vpack.c.b16 %v422, %v421
    %v512 = vpack.c.b16 %v424, %v423
    %v513 = vpack.c.b16 %v426, %v425
    %v514 = vpack.c.b16 %v428, %v427
    %v515 = vpack.c.b16 %v430, %v429
    %v516 = vpack.c.b16 %v432, %v431
    %v517 = vpack.c.b16 %v434, %v433
    %v518 = vpack.c.b16 %v436, %v435
    %v519 = vpack.c.b16 %v438, %v437
    %v520 = vpack.c.b16 %v440, %v439
    %v521 = vpack.c.b16 %v442, %v441
    %v522 = vpack.c.b16 %v444, %v443
    %v523 = vpack.c.b16 %v446, %v445
    %v524 = vpack.c.b16 %v448, %v447
    %v525 = vpack.c.b16 %v450, %v449
    %v526 = vpack.c.b16 %v452, %v451
    %v527 = vpack.c.b16 %v454, %v453
    %v528 = vpack.c.b16 %v456, %v455
    %v529 = vpack.c.b16 %v458, %v457
    %v530 = vpack.c.b16 %v460, %v459
    %v531 = vpack.c.b16 %v462, %v461
    %v532 = vpack.c.b16 %v464, %v463
    %v533 = vpack.c.b16 %v466, %v465
    %v534 = vpack.c.b16 %v468, %v467
    %v535 = vpack.c.b16 %v470, %v469
    %v536 = vpack.c.b16 %v472, %v471
    %601 = vmatprep.subr.bf16.mxu0 0
    %602 = vmatpush1.bf16.msra.mxu0 %v480
    %603 = vmatprep.subr.bf16.mxu0 0
    %604 = vmatpush1.bf16.msra.mxu0 %v479
    %605 = vmatprep.subr.bf16.mxu0 0
    %606 = vmatpush1.bf16.msra.mxu0 %v478
    %607 = vmatprep.subr.bf16.mxu0 0
    %608 = vmatpush1.bf16.msra.mxu0 %v477
    %609 = vmatprep.subr.bf16.mxu0 0
    %610 = vmatpush1.bf16.msra.mxu0 %v476
    %611 = vmatprep.subr.bf16.mxu0 0
    %612 = vmatpush1.bf16.msra.mxu0 %v475
    %613 = vmatprep.subr.bf16.mxu0 0
    %614 = vmatpush1.bf16.msra.mxu0 %v474
    %615 = vmatprep.subr.bf16.mxu0 0
    %616 = vmatpush1.bf16.msra.mxu0 %v473
    %617 = vmatprep.subr.bf16.mxu0 0
    %618 = vmatpush2.bf16.msra.mxu0 %v488
    %619 = vmatprep.subr.bf16.mxu0 0
    %620 = vmatpush2.bf16.msra.mxu0 %v487
    %621 = vmatprep.subr.bf16.mxu0 0
    %622 = vmatpush2.bf16.msra.mxu0 %v486
    %623 = vmatprep.subr.bf16.mxu0 0
    %624 = vmatpush2.bf16.msra.mxu0 %v485
    %625 = vmatprep.subr.bf16.mxu0 0
    %626 = vmatpush2.bf16.msra.mxu0 %v484
    %627 = vmatprep.subr.bf16.mxu0 0
    %628 = vmatpush2.bf16.msra.mxu0 %v483
    %629 = vmatprep.subr.bf16.mxu0 0
    %630 = vmatpush2.bf16.msra.mxu0 %v482
    %631 = vmatprep.subr.bf16.mxu0 0
    %632 = vmatpush2.bf16.msra.mxu0 %v481
    %633 = vmatprep.mubr.bf16.mxu0 %v82
    %634 = vmatmul.mubr.bf16.gmra.mxu0 %v81
    %v635 = vpop.f32.mrf.mxu0
    %v636 = vadd.f32 0.0, %v635
    %v637 = vpop.f32.mrf.mxu0
    %v638 = vpop.f32.mrf.mxu0
    %v639 = vadd.f32 0.0, %v638
    %v640 = vpop.f32.mrf.mxu0
    %641 = vdwg.mxu0
    %642 = vmatprep.subr.bf16.mxu0 0
    %643 = vmatpush1.bf16.msra.mxu0 %v496
    %644 = vmatprep.subr.bf16.mxu0 0
    %645 = vmatpush1.bf16.msra.mxu0 %v495
    %646 = vmatprep.subr.bf16.mxu0 0
    %647 = vmatpush1.bf16.msra.mxu0 %v494
    %648 = vmatprep.subr.bf16.mxu0 0
    %649 = vmatpush1.bf16.msra.mxu0 %v493
    %650 = vmatprep.subr.bf16.mxu0 0
    %651 = vmatpush1.bf16.msra.mxu0 %v492
    %652 = vmatprep.subr.bf16.mxu0 0
    %653 = vmatpush1.bf16.msra.mxu0 %v491
    %654 = vmatprep.subr.bf16.mxu0 0
    %655 = vmatpush1.bf16.msra.mxu0 %v490
    %656 = vmatprep.subr.bf16.mxu0 0
    %657 = vmatpush1.bf16.msra.mxu0 %v489
    %658 = vmatprep.subr.bf16.mxu0 0
    %659 = vmatpush2.bf16.msra.mxu0 %v504
    %660 = vmatprep.subr.bf16.mxu0 0
    %661 = vmatpush2.bf16.msra.mxu0 %v503
    %662 = vmatprep.subr.bf16.mxu0 0
    %663 = vmatpush2.bf16.msra.mxu0 %v502
    %664 = vmatprep.subr.bf16.mxu0 0
    %665 = vmatpush2.bf16.msra.mxu0 %v501
    %666 = vmatprep.subr.bf16.mxu0 0
    %667 = vmatpush2.bf16.msra.mxu0 %v500
    %668 = vmatprep.subr.bf16.mxu0 0
    %669 = vmatpush2.bf16.msra.mxu0 %v499
    %670 = vmatprep.subr.bf16.mxu0 0
    %671 = vmatpush2.bf16.msra.mxu0 %v498
    %672 = vmatprep.subr.bf16.mxu0 0
    %673 = vmatpush2.bf16.msra.mxu0 %v497
    %674 = vmatprep.mubr.bf16.mxu0 %v84
    %675 = vmatmul.mubr.bf16.gmra.mxu0 %v83
    %v676 = vpop.f32.mrf.mxu0
    %v677 = vadd.f32 %v636, %v676
    %v678 = vpop.f32.mrf.mxu0
    %v679 = vpop.f32.mrf.mxu0
    %v680 = vadd.f32 %v639, %v679
    %v681 = vpop.f32.mrf.mxu0
    %682 = vdwg.mxu0
    %683 = vmatprep.subr.bf16.mxu0 0
    %684 = vmatpush1.bf16.msra.mxu0 %v512
    %685 = vmatprep.subr.bf16.mxu0 0
    %686 = vmatpush1.bf16.msra.mxu0 %v511
    %687 = vmatprep.subr.bf16.mxu0 0
    %688 = vmatpush1.bf16.msra.mxu0 %v510
    %689 = vmatprep.subr.bf16.mxu0 0
    %690 = vmatpush1.bf16.msra.mxu0 %v509
    %691 = vmatprep.subr.bf16.mxu0 0
    %692 = vmatpush1.bf16.msra.mxu0 %v508
    %693 = vmatprep.subr.bf16.mxu0 0
    %694 = vmatpush1.bf16.msra.mxu0 %v507
    %695 = vmatprep.subr.bf16.mxu0 0
    %696 = vmatpush1.bf16.msra.mxu0 %v506
    %697 = vmatprep.subr.bf16.mxu0 0
    %698 = vmatpush1.bf16.msra.mxu0 %v505
    %699 = vmatprep.subr.bf16.mxu0 0
    %700 = vmatpush2.bf16.msra.mxu0 %v520
    %701 = vmatprep.subr.bf16.mxu0 0
    %702 = vmatpush2.bf16.msra.mxu0 %v519
    %703 = vmatprep.subr.bf16.mxu0 0
    %704 = vmatpush2.bf16.msra.mxu0 %v518
    %705 = vmatprep.subr.bf16.mxu0 0
    %706 = vmatpush2.bf16.msra.mxu0 %v517
    %707 = vmatprep.subr.bf16.mxu0 0
    %708 = vmatpush2.bf16.msra.mxu0 %v516
    %709 = vmatprep.subr.bf16.mxu0 0
    %710 = vmatpush2.bf16.msra.mxu0 %v515
    %711 = vmatprep.subr.bf16.mxu0 0
    %712 = vmatpush2.bf16.msra.mxu0 %v514
    %713 = vmatprep.subr.bf16.mxu0 0
    %714 = vmatpush2.bf16.msra.mxu0 %v513
    %715 = vmatprep.mubr.bf16.mxu0 %v86
    %716 = vmatmul.mubr.bf16.gmra.mxu0 %v85
    %v717 = vpop.f32.mrf.mxu0
    %v718 = vadd.f32 %v677, %v717
    %v719 = vpop.f32.mrf.mxu0
    %v720 = vpop.f32.mrf.mxu0
    %v721 = vadd.f32 %v680, %v720
    %v722 = vpop.f32.mrf.mxu0
    %723 = vdwg.mxu0
    %724 = vmatprep.subr.bf16.mxu0 0
    %725 = vmatpush1.bf16.msra.mxu0 %v528
    %726 = vmatprep.subr.bf16.mxu0 0
    %727 = vmatpush1.bf16.msra.mxu0 %v527
    %728 = vmatprep.subr.bf16.mxu0 0
    %729 = vmatpush1.bf16.msra.mxu0 %v526
    %730 = vmatprep.subr.bf16.mxu0 0
    %731 = vmatpush1.bf16.msra.mxu0 %v525
    %732 = vmatprep.subr.bf16.mxu0 0
    %733 = vmatpush1.bf16.msra.mxu0 %v524
    %734 = vmatprep.subr.bf16.mxu0 0
    %735 = vmatpush1.bf16.msra.mxu0 %v523
    %736 = vmatprep.subr.bf16.mxu0 0
    %737 = vmatpush1.bf16.msra.mxu0 %v522
    %738 = vmatprep.subr.bf16.mxu0 0
    %739 = vmatpush1.bf16.msra.mxu0 %v521
    %740 = vmatprep.subr.bf16.mxu0 0
    %741 = vmatpush2.bf16.msra.mxu0 %v536
    %742 = vmatprep.subr.bf16.mxu0 0
    %743 = vmatpush2.bf16.msra.mxu0 %v535
    %744 = vmatprep.subr.bf16.mxu0 0
    %745 = vmatpush2.bf16.msra.mxu0 %v534
    %746 = vmatprep.subr.bf16.mxu0 0
    %747 = vmatpush2.bf16.msra.mxu0 %v533
    %748 = vmatprep.subr.bf16.mxu0 0
    %749 = vmatpush2.bf16.msra.mxu0 %v532
    %750 = vmatprep.subr.bf16.mxu0 0
    %751 = vmatpush2.bf16.msra.mxu0 %v531
    %752 = vmatprep.subr.bf16.mxu0 0
    %753 = vmatpush2.bf16.msra.mxu0 %v530
    %754 = vmatprep.subr.bf16.mxu0 0
    %755 = vmatpush2.bf16.msra.mxu0 %v529
    %756 = vmatprep.mubr.bf16.mxu0 %v88
    %757 = vmatmul.mubr.bf16.gmra.mxu0 %v87
    %v758 = vpop.f32.mrf.mxu0
    %v759 = vadd.f32 %v718, %v758
    %v760 = vpop.f32.mrf.mxu0
    %v761 = vpop.f32.mrf.mxu0
    %v762 = vadd.f32 %v721, %v761
    %v763 = vpop.f32.mrf.mxu0
    %764 = vdwg.mxu0
    %v765 = vadd.f32 %v63, %v759
    %v766 = vadd.f32 %v64, %v762
    %767 = vst [vmem:[#allocation2] sm:$0xff] %v765
    %768 = vst [vmem:[#allocation2 + $0x8] sm:$0xff] %v766
    // Predicated region
    $region30: #{tpu_custom_call.1} parent=1 // pred_check
      %p769 = pneg %p57
    $region31: #{tpu_custom_call.1} parent=1 // pred_check_branch
      %771 = sbr.rel (%p769) target = $region33
    $region32: #{tpu_custom_call.1} parent=1 // pred_region
      %v772 = vld [vmem:[#allocation2] sm:$0xff]
      %v773 = vld [vmem:[#allocation2 + $0x8] sm:$0xff]
      %v774 = vmul.f32 %v772, %v772
      %v775 = vmul.f32 %v773, %v773
      %776 = vadd.xlane.f32.xlu0 %v774
      %v777 = vpop.xlane.xlu0 %776
      %778 = vadd.xlane.f32.xlu0 %v775
      %v779 = vpop.xlane.xlu0 %778
      %v780 = vmax.f32 %v777, 1e-30
      %v781 = vmax.f32 %v779, 1e-30
      %v782 = vrsqrt.pop %v780
      %v783 = vrsqrt.pop %v781
      %v784 = vpack.c.bf16 %v773, %v772
      %v785 = vld [vmem:[#allocation8] sm:$0xf]
      %v786 = vld [vmem:[#allocation8 + $0x4] sm:$0xf]
      %v787 = vld [vmem:[#allocation8 + $0x8] sm:$0xf]
      %v788 = vld [vmem:[#allocation8 + $0xc] sm:$0xf]
      %v789 = vld [vmem:[#allocation8 + $0x10] sm:$0xf]
      %v790 = vld [vmem:[#allocation8 + $0x14] sm:$0xf]
      %v791 = vld [vmem:[#allocation8 + $0x18] sm:$0xf]
      %v792 = vld [vmem:[#allocation8 + $0x1c] sm:$0xf]
      %v793 = vld [vmem:[#allocation8 + $0x20] sm:$0xf]
      %v794 = vld [vmem:[#allocation8 + $0x24] sm:$0xf]
      %v795 = vld [vmem:[#allocation8 + $0x28] sm:$0xf]
      %v796 = vld [vmem:[#allocation8 + $0x2c] sm:$0xf]
      %v797 = vld [vmem:[#allocation8 + $0x30] sm:$0xf]
      %v798 = vld [vmem:[#allocation8 + $0x34] sm:$0xf]
      %v799 = vld [vmem:[#allocation8 + $0x38] sm:$0xf]
      %v800 = vld [vmem:[#allocation8 + $0x3c] sm:$0xf]
      %v817 = vunpack.c.l.b16 %v785
      %v818 = vunpack.c.l.b16 %v786
      %v819 = vunpack.c.l.b16 %v787
      %v820 = vunpack.c.l.b16 %v788
      %v821 = vunpack.c.l.b16 %v789
      %v822 = vunpack.c.l.b16 %v790
      %v823 = vunpack.c.l.b16 %v791
      %v824 = vunpack.c.l.b16 %v792
      %v825 = vunpack.c.l.b16 %v793
      %v826 = vunpack.c.l.b16 %v794
      %v827 = vunpack.c.l.b16 %v795
      %v828 = vunpack.c.l.b16 %v796
      %v829 = vunpack.c.l.b16 %v797
      %v830 = vunpack.c.l.b16 %v798
      %v831 = vunpack.c.l.b16 %v799
      %v832 = vunpack.c.l.b16 %v800
      %v833 = vpack.c.b16 %v818, %v817
      %v834 = vpack.c.b16 %v820, %v819
      %v835 = vpack.c.b16 %v822, %v821
      %v836 = vpack.c.b16 %v824, %v823
      %v837 = vpack.c.b16 %v826, %v825
      %v838 = vpack.c.b16 %v828, %v827
      %v839 = vpack.c.b16 %v830, %v829
      %v840 = vpack.c.b16 %v832, %v831
      %849 = vmatprep.subr.bf16.mxu0 0
      %850 = vmatpush1.bf16.msra.mxu0 %v840
      %851 = vmatprep.subr.bf16.mxu0 0
      %852 = vmatpush1.bf16.msra.mxu0 %v839
      %853 = vmatprep.subr.bf16.mxu0 0
      %854 = vmatpush1.bf16.msra.mxu0 %v838
      %855 = vmatprep.subr.bf16.mxu0 0
      %856 = vmatpush1.bf16.msra.mxu0 %v837
      %857 = vmatprep.subr.bf16.mxu0 0
      %858 = vmatpush1.bf16.msra.mxu0 %v836
      %859 = vmatprep.subr.bf16.mxu0 0
      %860 = vmatpush1.bf16.msra.mxu0 %v835
      %861 = vmatprep.subr.bf16.mxu0 0
      %862 = vmatpush1.bf16.msra.mxu0 %v834
      %863 = vmatprep.subr.bf16.mxu0 0
      %864 = vmatpush1.bf16.msra.mxu0 %v833
      %865 = vmatprep.subr.bf16.mxu0 0
      %866 = vmatpush2.bf16.msra.mxu0 0
      %867 = vmatprep.subr.bf16.mxu0 0
      %868 = vmatpush2.bf16.msra.mxu0 0
      %869 = vmatprep.subr.bf16.mxu0 0
      %870 = vmatpush2.bf16.msra.mxu0 0
      %871 = vmatprep.subr.bf16.mxu0 0
      %872 = vmatpush2.bf16.msra.mxu0 0
      %873 = vmatprep.subr.bf16.mxu0 0
      %874 = vmatpush2.bf16.msra.mxu0 0
      %875 = vmatprep.subr.bf16.mxu0 0
      %876 = vmatpush2.bf16.msra.mxu0 0
      %877 = vmatprep.subr.bf16.mxu0 0
      %878 = vmatpush2.bf16.msra.mxu0 0
      %879 = vmatprep.subr.bf16.mxu0 0
      %880 = vmatpush2.bf16.msra.mxu0 0
      %881 = vmatprep.mubr.bf16.mxu0 0
      %882 = vmatmul.mubr.bf16.gmra.mxu0 %v784
      %v883 = vpop.f32.mrf.mxu0
      %v884 = vadd.f32 0.0, %v883
      %v885 = vpop.f32.mrf.mxu0
      %v886 = vpop.f32.mrf.mxu0
      %v887 = vadd.f32 0.0, %v886
      %v888 = vpop.f32.mrf.mxu0
      %889 = vdwg.mxu0
      %v890 = vmul.f32 %v884, %v782
      %v891 = vmul.f32 %v887, %v783
      %892 = vst [vmem:[#allocation9] sm:$0xff] %v890
      %893 = vst [vmem:[#allocation9 + $0x8] sm:$0xff] %v891
    $region33: #{tpu_custom_call.1} parent=1 // pred_fallthru
      _
    // Predicated region
    $region34: #{tpu_custom_call.1} parent=1 // pred_check
      _
    $region35: #{tpu_custom_call.1} parent=1 // pred_check_branch
      %895 = sbr.rel (0) target = $region37
    $region36: #{tpu_custom_call.1} parent=1 // pred_region
      %s897 = ssub.s32 256, 256
      %898 = vsyncadd [#allocation5], %s897
      %s899 = sshll.u32 [#allocation9], 4
      %s900 = int_to_ptr.vmem [resolvable:$true] %s899
      %905 = dma.vmem_to_hbm [thread:$0]  %s900, 256, %s3, [#allocation5], 128, 128, 8
    $region37: #{tpu_custom_call.1} parent=1 // pred_fallthru
      _
    // Predicated region
    $region38: #{tpu_custom_call.1} parent=1 // pred_check
      _
    $region39: #{tpu_custom_call.1} parent=1 // pred_check_branch
      %907 = sbr.rel (0) target = $region41
    $region40: #{tpu_custom_call.1} parent=1 // pred_region
      %908 = dma.done [#allocation5], 256
    $region41: #{tpu_custom_call.1} parent=1 // pred_fallthru
      _
    %909 = vsyncpa [#allocation4], 1
    %910 = vsyncpa [#allocation7], 1
    %911 = vsyncpa [#allocation5], 1

</llo_original>
